<compile_context>
chip_gen: v7x
topology: tpu7x:2x2x1
jax: 0.10.0
libtpu: 0.0.40
codegen_flags: <defaults>
</compile_context>

<pallas_src>
import functools

import jax
import jax.numpy as jnp
from jax import lax
from jax.experimental import pallas as pl
from jax.experimental.pallas import tpu as pltpu


def _round_up(x, m):
    return ((x + m - 1) // m) * m


def _tile_budget_bytes():
    """(per-buffer x-tile budget, vmem-limit cap) tuned per TPU generation."""
    try:
        kind = jax.devices()[0].device_kind.lower()
    except Exception:
        kind = ""
    if any(g in kind for g in ("v4", "v5", "v6")):
        # 128 MiB physical VMEM: big tiles amortize the ~0.35us per-step cost.
        return 24 * 1024 * 1024, 96 * 1024 * 1024
    # v7x (64 MiB physical per TC) and unknown targets: stay conservative.
    return 16 * 1024 * 1024, 48 * 1024 * 1024


def _linear_kernel(x_ref, w_ref, b_ref, o_ref, acc_ref, *,
                   activation, block_d, d_total, d_tail):
    """One (batch-tile, d-tile) grid step of y = x @ w^T + b.

    x_ref:   (TB, TD) VMEM   current batch x contraction tile of x
    w_ref:   (1, TD)  VMEM   matching slice of the weight row
    b_ref:   (1, 1)   SMEM   bias scalar
    o_ref:   (1, TB)  VMEM   lane-dense output slice for this batch tile
    acc_ref: (1, TB)  VMEM   f32 running partial sums across the d grid axis
    """
    k = pl.program_id(1)
    nk = pl.num_programs(1)

    @pl.when(k == 0)
    def _init():
        acc_ref[...] = jnp.zeros_like(acc_ref)

    def _accumulate(x_tile):
        # (1, TD) . (TB, TD)^T -> (1, TB): lane-dense partial sums on the MXU,
        # f32 accumulation regardless of input dtype (bf16 stays bf16 into MXU).
        acc_ref[...] += lax.dot_general(
            w_ref[...], x_tile,
            dimension_numbers=(((1,), (1,)), ((), ())),
            preferred_element_type=jnp.float32,
            precision=lax.Precision.HIGHEST)

    if d_tail:
        # The last d-tile overruns input_dim: zero the out-of-range lanes of x
        # (the weight row is zero-padded host-side, so w is never garbage).
        @pl.when(k < nk - 1)
        def _body():
            _accumulate(x_ref[...])

        @pl.when(k == nk - 1)
        def _tail():
            x = x_ref[...]
            lane = lax.broadcasted_iota(jnp.int32, x.shape, 1)
            valid = (k * block_d + lane) < d_total
            _accumulate(jnp.where(valid, x, jnp.zeros_like(x)))
    else:
        _accumulate(x_ref[...])

    @pl.when(k == nk - 1)
    def _finalize():
        y = acc_ref[...] + b_ref[0, 0]
        if activation is not None:
            y = activation(y)
        o_ref[...] = y.astype(o_ref.dtype)


def neural_net_forward(x, weight, bias, output_activation=None, *,
                       block_batch=None, block_d=None):
    """Forward pass of NeuralNet.

    Args:
      x:      (batch, input_dim) float array
      weight: (1, input_dim) float array (PyTorch nn.Linear weight layout)
      bias:   (1,) float array
      output_activation: optional elementwise jnp function (e.g. jax.nn.sigmoid)
      block_batch / block_d: optional tile overrides.

    Returns:
      logits: (batch, 1), dtype of x.
    """
    batch, input_dim = x.shape
    itemsize = jnp.dtype(x.dtype).itemsize
    lane_d = _round_up(input_dim, 128)            # VMEM rows are lane-padded
    row_bytes = lane_d * itemsize
    tile_budget, vmem_cap = _tile_budget_bytes()

    # ------------------------------ default tile sizes -----------------------
    rows_fit = tile_budget // row_bytes
    if rows_fit >= max(min(batch, 128), 1):
        # Full-width rows fit: tile over batch only. For batch > 128 keep at
        # least 2 batch tiles so the "parallel" axis shards across v7x's 2 TCs.
        tb = batch if batch <= 128 else min(rows_fit,
                                            _round_up(pl.cdiv(batch, 2), 128))
        td = input_dim
    else:
        # Very wide rows: also tile the contraction (input_dim) axis.
        tb = batch if batch <= 128 else 128
        td = max(128, (tile_budget // (max(tb, 8) * itemsize)) // 128 * 128)

    # ------------------------------ user overrides ---------------------------
    if block_batch is not None:
        tb = block_batch
    if block_d is not None:
        td = block_d

    # --------------------- normalize to TPU block constraints ----------------
    # A block dim may be arbitrary if it spans the full array; otherwise the
    # minor dim must be a multiple of 128 (tb is also the output lane dim).
    if tb >= batch:
        tb = batch
    else:
        tb = max(128, (tb // 128) * 128)
        if tb >= batch:
            tb = batch
    if td >= input_dim:
        td = input_dim
    else:
        td = max(128, (td // 128) * 128)
        if td >= input_dim:
            td = input_dim

    nb = pl.cdiv(batch, tb)
    nk = pl.cdiv(input_dim, td)
    padded_d = nk * td
    d_tail = padded_d > input_dim

    # Weight as a lane-major row; zero-pad (tiny array) so its d-blocks are
    # never partial. x itself is never padded/copied.
    w_row = jnp.asarray(weight, dtype=x.dtype).reshape(1, input_dim)
    if d_tail:
        w_row = jnp.pad(w_row, ((0, 0), (0, padded_d - input_dim)))
    b_smem = jnp.asarray(bias, dtype=jnp.float32).reshape(1, 1)

    kernel = functools.partial(
        _linear_kernel, activation=output_activation,
        block_d=td, d_total=input_dim, d_tail=d_tail)

    # Only raise the scoped-VMEM limit when the tiles actually need it; tiny
    # problems keep the (always valid) compiler default.
    est_vmem = (2 * _round_up(tb, 16) * _round_up(td, 128) * itemsize   # x (dbl buf)
                + 2 * 16 * _round_up(td, 128) * itemsize                # weight
                + 3 * 8 * _round_up(tb, 128) * 4)                       # out + acc
    compiler_kwargs = dict(dimension_semantics=("parallel", "arbitrary"))
    if est_vmem > 16 * 1024 * 1024:
        compiler_kwargs["vmem_limit_bytes"] = int(min(vmem_cap,
                                                      est_vmem + (8 << 20)))

    out = pl.pallas_call(
        kernel,
        out_shape=jax.ShapeDtypeStruct((1, batch), x.dtype),
        grid=(nb, nk),
        in_specs=[
            pl.BlockSpec((tb, td), lambda i, k: (i, k)),         # x: streamed tiles
            pl.BlockSpec((1, td), lambda i, k: (0, k)),          # weight slice
            pl.BlockSpec(memory_space=pltpu.MemorySpace.SMEM),   # bias scalar
        ],
        out_specs=pl.BlockSpec((1, tb), lambda i, k: (0, i)),    # lane-dense output
        scratch_shapes=[pltpu.VMEM((1, tb), jnp.float32)],       # f32 accumulator
        compiler_params=pltpu.CompilerParams(**compiler_kwargs),
    )(x, w_row, b_smem)

    # (1, batch) -> (batch, 1): pure metadata reshape of the tiny output.
    return out.reshape(batch, 1)


def _reference(x, weight, bias, act=None):
    # Exact f32 elementwise reference (avoids XLA's default bf16 matmul passes).
    y = jnp.sum(x.astype(jnp.float32) * weight.astype(jnp.float32),
                axis=-1, keepdims=True) + bias.astype(jnp.float32)
    return act(y) if act is not None else y


if __name__ == "__main__":
    key = jax.random.PRNGKey(0)
    k_x1, k_w, k_b, k_x2, k_x3, k_w3 = jax.random.split(key, 6)

    input_dim = 32
    bound = 1.0 / (input_dim ** 0.5)
    weight = jax.random.uniform(k_w, (1, input_dim), minval=-bound, maxval=bound,
                                dtype=jnp.float32)
    bias = jax.random.uniform(k_b, (1,), minval=-bound, maxval=bound,
                              dtype=jnp.float32)

    # 1) Plain linear head, batch multiple of 8, no activation.
    x1 = jax.random.normal(k_x1, (8, input_dim), dtype=jnp.float32)
    out1 = jax.block_until_ready(neural_net_forward(x1, weight, bias))
    ref1 = _reference(x1, weight, bias)
    assert out1.shape == (8, 1)
    assert jnp.allclose(out1, ref1, atol=1e-4, rtol=1e-4)

    # 2) Ragged batch (13) + sigmoid output activation (partial batch block).
    x2 = jax.random.normal(k_x2, (13, input_dim), dtype=jnp.float32)
    out2 = jax.block_until_ready(
        neural_net_forward(x2, weight, bias, output_activation=jax.nn.sigmoid))
    ref2 = _reference(x2, weight, bias, jax.nn.sigmoid)
    assert out2.shape == (13, 1)
    assert jnp.allclose(out2, ref2, atol=1e-4, rtol=1e-4)

    # 3) Multi-tile path: batch tiling + d tiling with ragged tails on both axes
    #    (exercises the accumulator init/finalize and the in-kernel tail mask).
    d3, b3 = 200, 300
    bound3 = 1.0 / (d3 ** 0.5)
    w3 = jax.random.uniform(k_w3, (1, d3), minval=-bound3, maxval=bound3,
                            dtype=jnp.float32)
    x3 = jax.random.normal(k_x3, (b3, d3), dtype=jnp.float32)
    out3 = jax.block_until_ready(
        neural_net_forward(x3, w3, bias, output_activation=jnp.tanh,
                           block_batch=128, block_d=128))
    ref3 = _reference(x3, w3, bias, jnp.tanh)
    assert out3.shape == (b3, 1)
    assert jnp.allclose(out3, ref3, atol=1e-4, rtol=1e-4)

    print("KERNEL_OK")
</pallas_src>

<mosaic_0001>
module attributes {stable_mosaic.version = 11 : i64} {
  func.func @_linear_kernel(%arg0: i32, %arg1: i32, %arg2: memref<8x32xf32, #tpu.memory_space<vmem>>, %arg3: memref<1x32xf32, #tpu.memory_space<vmem>>, %arg4: memref<1x1xf32, #tpu.memory_space<smem>>, %arg5: memref<1x8xf32, #tpu.memory_space<vmem>>, %arg6: memref<1x8xf32, #tpu.memory_space<vmem>>) attributes {dimension_semantics = [#tpu.dimension_semantics<parallel>, #tpu.dimension_semantics<arbitrary>], iteration_bounds = array<i64: 1, 1>, scalar_prefetch = 0 : i64, scratch_operands = 1 : i64, tpu.core_type = #tpu.core_type<tc>, window_params = [{transform_indices = @transform_0, window_bounds = array<i64: 8, 32>}, {transform_indices = @transform_1, window_bounds = array<i64: 1, 32>}, {transform_indices = @transform_2, window_bounds = array<i64: 1, 1>}, {transform_indices = @transform_3, window_bounds = array<i64: 1, 8>}]} {
    %c0_i32 = arith.constant 0 : i32
    %0 = arith.cmpi eq, %arg1, %c0_i32 : i32
    %1 = arith.extui %0 : i1 to i32
    %c0_i32_0 = arith.constant 0 : i32
    %2 = arith.cmpi ne, %1, %c0_i32_0 : i32
    scf.if %2 {
      %cst_10 = arith.constant 0.000000e+00 : f32
      %12 = vector.broadcast %cst_10 : f32 to vector<1x8xf32>
      %c0_11 = arith.constant 0 : index
      %c0_12 = arith.constant 0 : index
      %13 = vector.load %arg6[%c0_11, %c0_12] : memref<1x8xf32, #tpu.memory_space<vmem>>, vector<1x8xf32>
      tpu.vector_store %arg6[%c0_11, %c0_12], %12 {strides = array<i32>} : memref<1x8xf32, #tpu.memory_space<vmem>>, vector<1x8xf32>,
    } else {
    }
    %c0 = arith.constant 0 : index
    %c0_1 = arith.constant 0 : index
    %3 = vector.load %arg2[%c0, %c0_1] : memref<8x32xf32, #tpu.memory_space<vmem>>, vector<8x32xf32>
    %c0_2 = arith.constant 0 : index
    %c0_3 = arith.constant 0 : index
    %4 = vector.load %arg6[%c0_2, %c0_3] : memref<1x8xf32, #tpu.memory_space<vmem>>, vector<1x8xf32>
    %c0_4 = arith.constant 0 : index
    %c0_5 = arith.constant 0 : index
    %5 = vector.load %arg3[%c0_4, %c0_5] : memref<1x32xf32, #tpu.memory_space<vmem>>, vector<1x32xf32>
    %cst = arith.constant dense<0.000000e+00> : vector<1x8xf32>
    %6 = tpu.matmul %5, %3, %cst {dimension_numbers = #tpu.dot_dimension_numbers<[1], [1], [0], [0], [0, 0, 1, 0], [], []>, precision = #tpu.contract_precision<fp32>} : vector<1x32xf32>, vector<8x32xf32>, vector<1x8xf32> -> vector<1x8xf32>
    %7 = arith.addf %4, %6 : vector<1x8xf32>
    %c0_6 = arith.constant 0 : index
    %c0_7 = arith.constant 0 : index
    %8 = vector.load %arg6[%c0_6, %c0_7] : memref<1x8xf32, #tpu.memory_space<vmem>>, vector<1x8xf32>
    tpu.vector_store %arg6[%c0_6, %c0_7], %7 {strides = array<i32>} : memref<1x8xf32, #tpu.memory_space<vmem>>, vector<1x8xf32>,
    %c0_i32_8 = arith.constant 0 : i32
    %9 = arith.cmpi eq, %arg1, %c0_i32_8 : i32
    %10 = arith.extui %9 : i1 to i32
    %c0_i32_9 = arith.constant 0 : i32
    %11 = arith.cmpi ne, %10, %c0_i32_9 : i32
    scf.if %11 {
      %c0_10 = arith.constant 0 : index
      %c0_11 = arith.constant 0 : index
      %12 = vector.load %arg6[%c0_10, %c0_11] : memref<1x8xf32, #tpu.memory_space<vmem>>, vector<1x8xf32>
      %c0_12 = arith.constant 0 : index
      %c0_13 = arith.constant 0 : index
      %13 = memref.load %arg4[%c0_12, %c0_13] : memref<1x1xf32, #tpu.memory_space<smem>>
      %14 = vector.broadcast %13 : f32 to vector<1x8xf32>
      %15 = arith.addf %12, %14 : vector<1x8xf32>
      %c0_14 = arith.constant 0 : index
      %c0_15 = arith.constant 0 : index
      %16 = vector.load %arg5[%c0_14, %c0_15] : memref<1x8xf32, #tpu.memory_space<vmem>>, vector<1x8xf32>
      tpu.vector_store %arg5[%c0_14, %c0_15], %15 {strides = array<i32>} : memref<1x8xf32, #tpu.memory_space<vmem>>, vector<1x8xf32>,
    } else {
    }
    return
  }
  func.func @transform_0(%arg0: i32, %arg1: i32) -> (i32, i32) {
    %c0_i32 = arith.constant 0 : i32
    return %arg0, %arg1 : i32, i32
  }
  func.func @transform_1(%arg0: i32, %arg1: i32) -> (i32, i32) {
    %c0_i32 = arith.constant 0 : i32
    %c0_i32_0 = arith.constant 0 : i32
    return %c0_i32, %arg1 : i32, i32
  }
  func.func @transform_2(%arg0: i32, %arg1: i32) -> (i32, i32) {
    %c0_i32 = arith.constant 0 : i32
    %c0_i32_0 = arith.constant 0 : i32
    %c0_i32_1 = arith.constant 0 : i32
    return %c0_i32, %c0_i32_0 : i32, i32
  }
  func.func @transform_3(%arg0: i32, %arg1: i32) -> (i32, i32) {
    %c0_i32 = arith.constant 0 : i32
    %c0_i32_0 = arith.constant 0 : i32
    return %c0_i32, %arg0 : i32, i32
  }
}

</mosaic_0001>

<llo_original>
// kernel: tpu_custom_call.1
$region0: #{tpu_custom_call.1}
  #allocation0 [shape = 'u32[]', space=smem, size = 0x4, offset = 0x4, fixed_abs, tag = 'smem constant byte address 0x4 - core index']
  #allocation1 [shape = 'u32[144,128]{1,0:T(1,128)}', space=vmem, size = 0x12000, scoped, tag = 'internal scratch']
  #allocation2 [shape = 'f32[1,8]{1,0:T(1,128)}', space=vmem, size = 0x200, scoped, tag = 'scratch operand']
  #allocation3 [shape = 'f32[1,1]{1,0:T(1,128)S(6)}', space=smem, size = 0x200, scoped, tag = 'scoped memory for tpu_custom_call.1']
  %s0 = inlined_call_operand.hbm [shape: f32[8,32], index: 0, kind: input, shape index: {}]
  %s1 = inlined_call_operand.vmem [shape: f32[1,32], index: 1, kind: input, shape index: {}]
  %s2 = inlined_call_operand.<no memory space> [shape: f32[1,1], index: 2, kind: input, shape index: {}]
  %s3 = inlined_call_operand.hbm [shape: f32[1,8], index: 3, kind: output, shape index: {}]
  %s4 = sld [smem:[#allocation0]]
  $region34: #{tpu_custom_call.1} parent=0
    _
  %s6 = ssub.s32 1, %s4
  %s7 = scalar_select 0, %s6, %s4
  %8 = sst [smem:[#allocation3]] %s2
  $region1: #{tpu_custom_call.1} parent=0
    #allocation4 [shape = 'u8[4096]{0}', space=vmem, size = 0x1000, scoped, tag = 'input window, operand 0, single buffered']
    #allocation5 [shape = 's32[1]{0}', space=sflag, size = 0x4, scoped, tag = 'scoped memory for tpu_custom_call.1']
    #allocation6 [shape = 's32[1]{0}', space=sflag, size = 0x4, scoped, tag = 'scoped memory for tpu_custom_call.1']
    #allocation7 [shape = 'u8[512]{0}', space=vmem, size = 0x400, scoped, tag = 'output window, operand 0, single buffered']
    %9 = vsyncpa [#allocation5], 0
    %10 = vsyncpa [#allocation6], 0
    // Predicated region
    $region2: #{tpu_custom_call.1} parent=1 // pred_check
      _
    $region3: #{tpu_custom_call.1} parent=1 // pred_check_branch
      %12 = sbr.rel (0) target = $region5
    $region4: #{tpu_custom_call.1} parent=1 // pred_region
      %s14 = ssub.s32 128, 128
      %15 = vsyncadd [#allocation5], %s14
      %s17 = sshll.u32 [#allocation4], 4
      %s18 = int_to_ptr.vmem [resolvable:$true] %s17
      %20 = dma.hbm_to_vmem [thread:$0]  %s0, 128, %s18, [#allocation5]
    $region5: #{tpu_custom_call.1} parent=1 // pred_fallthru
      _
    // Predicated region
    $region6: #{tpu_custom_call.1} parent=1 // pred_check
      _
    $region7: #{tpu_custom_call.1} parent=1 // pred_check_branch
      %22 = sbr.rel (0) target = $region9
    $region8: #{tpu_custom_call.1} parent=1 // pred_region
      _
    $region9: #{tpu_custom_call.1} parent=1 // pred_fallthru
      _
    // Predicated region
    $region10: #{tpu_custom_call.1} parent=1 // pred_check
      _
    $region11: #{tpu_custom_call.1} parent=1 // pred_check_branch
      %24 = sbr.rel (0) target = $region13
    $region12: #{tpu_custom_call.1} parent=1 // pred_region
      _
    $region13: #{tpu_custom_call.1} parent=1 // pred_fallthru
      _
    // Predicated region
    $region14: #{tpu_custom_call.1} parent=1 // pred_check
      _
    $region15: #{tpu_custom_call.1} parent=1 // pred_check_branch
      %26 = sbr.rel (0) target = $region17
    $region16: #{tpu_custom_call.1} parent=1 // pred_region
      %27 = dma.done [#allocation5], 128
    $region17: #{tpu_custom_call.1} parent=1 // pred_fallthru
      _
    %p28 = scmp.eq.s32.totalorder 0, 0
    // Predicated region
    $region18: #{tpu_custom_call.1} parent=1 // pred_check
      %p29 = pneg %p28
    $region19: #{tpu_custom_call.1} parent=1 // pred_check_branch
      %31 = sbr.rel (%p29) target = $region21
    $region20: #{tpu_custom_call.1} parent=1 // pred_region
      %vm32 = vcmask 57344
      %33 = vst.msk [vmem:[#allocation2] sm:$0x1] %vm32, 0.0
    $region21: #{tpu_custom_call.1} parent=1 // pred_fallthru
      _
    %v34 = vld [vmem:[#allocation4] sm:$0xff]
    %v35 = vld [vmem:[#allocation2] sm:$0x1]
    %v36 = vld [vmem:[%s1] sm:$0x1]
    %vm37 = vcmask 261120
    %v39 = vsel %vm37, %v36, 0
    %v42 = vsel %vm37, %v34, 0
    %44 = vmatprep.subr.mxu0 0.0
    %v45 = vand.u32 %v42, 4294901760
    %46 = vmatpush1.xpose.msra.mxu0 %v45
    %47 = vmatprep.subr.mxu0 0.0
    %48 = vmatpush1.xpose.msra.mxu0 0.0
    %49 = vmatprep.subr.mxu0 0.0
    %50 = vmatpush1.xpose.msra.mxu0 0.0
    %51 = vmatprep.subr.mxu0 0.0
    %52 = vmatpush1.xpose.msra.mxu0 0.0
    %53 = vmatprep.subr.mxu0 0.0
    %54 = vmatpush1.xpose.msra.mxu0 0.0
    %55 = vmatprep.subr.mxu0 0.0
    %56 = vmatpush1.xpose.msra.mxu0 0.0
    %57 = vmatprep.subr.mxu0 0.0
    %58 = vmatpush1.xpose.msra.mxu0 0.0
    %59 = vmatprep.subr.mxu0 0.0
    %60 = vmatpush1.xpose.msra.mxu0 0.0
    %61 = vmatprep.subr.mxu0 0.0
    %62 = vmatpush1.xpose.msra.mxu0 0.0
    %63 = vmatprep.subr.mxu0 0.0
    %64 = vmatpush1.xpose.msra.mxu0 0.0
    %65 = vmatprep.subr.mxu0 0.0
    %66 = vmatpush1.xpose.msra.mxu0 0.0
    %67 = vmatprep.subr.mxu0 0.0
    %68 = vmatpush1.xpose.msra.mxu0 0.0
    %69 = vmatprep.subr.mxu0 0.0
    %70 = vmatpush1.xpose.msra.mxu0 0.0
    %71 = vmatprep.subr.mxu0 0.0
    %72 = vmatpush1.xpose.msra.mxu0 0.0
    %73 = vmatprep.subr.mxu0 0.0
    %74 = vmatpush1.xpose.msra.mxu0 0.0
    %75 = vmatprep.subr.mxu0 0.0
    %76 = vmatpush1.xpose.msra.mxu0 0.0
    %77 = vmatprep.subr.mxu0 0.0
    %78 = vmatpush1.xpose.msra.mxu0 0.0
    %79 = vmatprep.subr.mxu0 0.0
    %80 = vmatpush1.xpose.msra.mxu0 0.0
    %81 = vmatprep.subr.mxu0 0.0
    %82 = vmatpush1.xpose.msra.mxu0 0.0
    %83 = vmatprep.subr.mxu0 0.0
    %84 = vmatpush1.xpose.msra.mxu0 0.0
    %85 = vmatprep.subr.mxu0 0.0
    %86 = vmatpush1.xpose.msra.mxu0 0.0
    %87 = vmatprep.subr.mxu0 0.0
    %88 = vmatpush1.xpose.msra.mxu0 0.0
    %89 = vmatprep.subr.mxu0 0.0
    %90 = vmatpush1.xpose.msra.mxu0 0.0
    %91 = vmatprep.subr.mxu0 0.0
    %92 = vmatpush1.xpose.msra.mxu0 0.0
    %93 = vmatprep.subr.mxu0 0.0
    %94 = vmatpush1.xpose.msra.mxu0 0.0
    %95 = vmatprep.subr.mxu0 0.0
    %96 = vmatpush1.xpose.msra.mxu0 0.0
    %97 = vmatprep.subr.mxu0 0.0
    %98 = vmatpush1.xpose.msra.mxu0 0.0
    %99 = vmatprep.subr.mxu0 0.0
    %100 = vmatpush1.xpose.msra.mxu0 0.0
    %101 = vmatprep.subr.mxu0 0.0
    %102 = vmatpush1.xpose.msra.mxu0 0.0
    %103 = vmatprep.subr.mxu0 0.0
    %104 = vmatpush1.xpose.msra.mxu0 0.0
    %105 = vmatprep.subr.mxu0 0.0
    %106 = vmatpush1.xpose.msra.mxu0 0.0
    %107 = vmatprep.subr.mxu0 0.0
    %108 = vmatpush1.xpose.msra.mxu0 0.0
    %109 = vmatprep.mubr.f32.mxu0 0.0
    %v110 = vand.u32 %v39, 4294901760
    %v111 = vsub.f32 %v39, %v110
    %v112 = vand.u32 %v111, 4294901760
    %v113 = vsub.f32 %v111, %v112
    %v114 = vand.u32 %v113, 4294901760
    %115 = vmatmul.mubr.f32.gmra.mrb[0].mxu0 %v114
    %v116 = vpop.f32.mrb[0].mxu0
    %v117 = vadd.f32 0.0, %v116
    %v118 = vpop.f32.mrb[0].mxu0
    %119 = vdwg.mxu0
    %120 = vmatprep.subr.mxu0 0.0
    %v121 = vand.u32 %v42, 4294901760
    %v122 = vsub.f32 %v42, %v121
    %v123 = vand.u32 %v122, 4294901760
    %v124 = vsub.f32 %v122, %v123
    %v125 = vand.u32 %v124, 4294901760
    %126 = vmatpush1.xpose.msra.mxu0 %v125
    %127 = vmatprep.subr.mxu0 0.0
    %128 = vmatpush1.xpose.msra.mxu0 0.0
    %129 = vmatprep.subr.mxu0 0.0
    %130 = vmatpush1.xpose.msra.mxu0 0.0
    %131 = vmatprep.subr.mxu0 0.0
    %132 = vmatpush1.xpose.msra.mxu0 0.0
    %133 = vmatprep.subr.mxu0 0.0
    %134 = vmatpush1.xpose.msra.mxu0 0.0
    %135 = vmatprep.subr.mxu0 0.0
    %136 = vmatpush1.xpose.msra.mxu0 0.0
    %137 = vmatprep.subr.mxu0 0.0
    %138 = vmatpush1.xpose.msra.mxu0 0.0
    %139 = vmatprep.subr.mxu0 0.0
    %140 = vmatpush1.xpose.msra.mxu0 0.0
    %141 = vmatprep.subr.mxu0 0.0
    %142 = vmatpush1.xpose.msra.mxu0 0.0
    %143 = vmatprep.subr.mxu0 0.0
    %144 = vmatpush1.xpose.msra.mxu0 0.0
    %145 = vmatprep.subr.mxu0 0.0
    %146 = vmatpush1.xpose.msra.mxu0 0.0
    %147 = vmatprep.subr.mxu0 0.0
    %148 = vmatpush1.xpose.msra.mxu0 0.0
    %149 = vmatprep.subr.mxu0 0.0
    %150 = vmatpush1.xpose.msra.mxu0 0.0
    %151 = vmatprep.subr.mxu0 0.0
    %152 = vmatpush1.xpose.msra.mxu0 0.0
    %153 = vmatprep.subr.mxu0 0.0
    %154 = vmatpush1.xpose.msra.mxu0 0.0
    %155 = vmatprep.subr.mxu0 0.0
    %156 = vmatpush1.xpose.msra.mxu0 0.0
    %157 = vmatprep.subr.mxu0 0.0
    %158 = vmatpush1.xpose.msra.mxu0 0.0
    %159 = vmatprep.subr.mxu0 0.0
    %160 = vmatpush1.xpose.msra.mxu0 0.0
    %161 = vmatprep.subr.mxu0 0.0
    %162 = vmatpush1.xpose.msra.mxu0 0.0
    %163 = vmatprep.subr.mxu0 0.0
    %164 = vmatpush1.xpose.msra.mxu0 0.0
    %165 = vmatprep.subr.mxu0 0.0
    %166 = vmatpush1.xpose.msra.mxu0 0.0
    %167 = vmatprep.subr.mxu0 0.0
    %168 = vmatpush1.xpose.msra.mxu0 0.0
    %169 = vmatprep.subr.mxu0 0.0
    %170 = vmatpush1.xpose.msra.mxu0 0.0
    %171 = vmatprep.subr.mxu0 0.0
    %172 = vmatpush1.xpose.msra.mxu0 0.0
    %173 = vmatprep.subr.mxu0 0.0
    %174 = vmatpush1.xpose.msra.mxu0 0.0
    %175 = vmatprep.subr.mxu0 0.0
    %176 = vmatpush1.xpose.msra.mxu0 0.0
    %177 = vmatprep.subr.mxu0 0.0
    %178 = vmatpush1.xpose.msra.mxu0 0.0
    %179 = vmatprep.subr.mxu0 0.0
    %180 = vmatpush1.xpose.msra.mxu0 0.0
    %181 = vmatprep.subr.mxu0 0.0
    %182 = vmatpush1.xpose.msra.mxu0 0.0
    %183 = vmatprep.subr.mxu0 0.0
    %184 = vmatpush1.xpose.msra.mxu0 0.0
    %185 = vmatprep.subr.mxu0 0.0
    %186 = vmatpush1.xpose.msra.mxu0 0.0
    %187 = vmatprep.subr.mxu0 0.0
    %188 = vmatpush1.xpose.msra.mxu0 0.0
    %189 = vmatprep.mubr.f32.mxu0 0.0
    %v190 = vand.u32 %v39, 4294901760
    %191 = vmatmul.mubr.f32.gmra.mrb[0].mxu0 %v190
    %v192 = vpop.f32.mrb[0].mxu0
    %v193 = vadd.f32 %v117, %v192
    %v194 = vpop.f32.mrb[0].mxu0
    %195 = vdwg.mxu0
    %196 = vmatprep.subr.mxu0 0.0
    %v197 = vand.u32 %v42, 4294901760
    %v198 = vsub.f32 %v42, %v197
    %199 = vmatpush1.xpose.msra.mxu0 %v198
    %200 = vmatprep.subr.mxu0 0.0
    %201 = vmatpush1.xpose.msra.mxu0 0.0
    %202 = vmatprep.subr.mxu0 0.0
    %203 = vmatpush1.xpose.msra.mxu0 0.0
    %204 = vmatprep.subr.mxu0 0.0
    %205 = vmatpush1.xpose.msra.mxu0 0.0
    %206 = vmatprep.subr.mxu0 0.0
    %207 = vmatpush1.xpose.msra.mxu0 0.0
    %208 = vmatprep.subr.mxu0 0.0
    %209 = vmatpush1.xpose.msra.mxu0 0.0
    %210 = vmatprep.subr.mxu0 0.0
    %211 = vmatpush1.xpose.msra.mxu0 0.0
    %212 = vmatprep.subr.mxu0 0.0
    %213 = vmatpush1.xpose.msra.mxu0 0.0
    %214 = vmatprep.subr.mxu0 0.0
    %215 = vmatpush1.xpose.msra.mxu0 0.0
    %216 = vmatprep.subr.mxu0 0.0
    %217 = vmatpush1.xpose.msra.mxu0 0.0
    %218 = vmatprep.subr.mxu0 0.0
    %219 = vmatpush1.xpose.msra.mxu0 0.0
    %220 = vmatprep.subr.mxu0 0.0
    %221 = vmatpush1.xpose.msra.mxu0 0.0
    %222 = vmatprep.subr.mxu0 0.0
    %223 = vmatpush1.xpose.msra.mxu0 0.0
    %224 = vmatprep.subr.mxu0 0.0
    %225 = vmatpush1.xpose.msra.mxu0 0.0
    %226 = vmatprep.subr.mxu0 0.0
    %227 = vmatpush1.xpose.msra.mxu0 0.0
    %228 = vmatprep.subr.mxu0 0.0
    %229 = vmatpush1.xpose.msra.mxu0 0.0
    %230 = vmatprep.subr.mxu0 0.0
    %231 = vmatpush1.xpose.msra.mxu0 0.0
    %232 = vmatprep.subr.mxu0 0.0
    %233 = vmatpush1.xpose.msra.mxu0 0.0
    %234 = vmatprep.subr.mxu0 0.0
    %235 = vmatpush1.xpose.msra.mxu0 0.0
    %236 = vmatprep.subr.mxu0 0.0
    %237 = vmatpush1.xpose.msra.mxu0 0.0
    %238 = vmatprep.subr.mxu0 0.0
    %239 = vmatpush1.xpose.msra.mxu0 0.0
    %240 = vmatprep.subr.mxu0 0.0
    %241 = vmatpush1.xpose.msra.mxu0 0.0
    %242 = vmatprep.subr.mxu0 0.0
    %243 = vmatpush1.xpose.msra.mxu0 0.0
    %244 = vmatprep.subr.mxu0 0.0
    %245 = vmatpush1.xpose.msra.mxu0 0.0
    %246 = vmatprep.subr.mxu0 0.0
    %247 = vmatpush1.xpose.msra.mxu0 0.0
    %248 = vmatprep.subr.mxu0 0.0
    %249 = vmatpush1.xpose.msra.mxu0 0.0
    %250 = vmatprep.subr.mxu0 0.0
    %251 = vmatpush1.xpose.msra.mxu0 0.0
    %252 = vmatprep.subr.mxu0 0.0
    %253 = vmatpush1.xpose.msra.mxu0 0.0
    %254 = vmatprep.subr.mxu0 0.0
    %255 = vmatpush1.xpose.msra.mxu0 0.0
    %256 = vmatprep.subr.mxu0 0.0
    %257 = vmatpush1.xpose.msra.mxu0 0.0
    %258 = vmatprep.subr.mxu0 0.0
    %259 = vmatpush1.xpose.msra.mxu0 0.0
    %260 = vmatprep.subr.mxu0 0.0
    %261 = vmatpush1.xpose.msra.mxu0 0.0
    %262 = vmatprep.mubr.f32.mxu0 0.0
    %v263 = vand.u32 %v39, 4294901760
    %v264 = vsub.f32 %v39, %v263
    %265 = vmatmul.mubr.f32.gmra.mrb[0].mxu0 %v264
    %v266 = vpop.f32.mrb[0].mxu0
    %v267 = vadd.f32 %v193, %v266
    %v268 = vpop.f32.mrb[0].mxu0
    %269 = vdwg.mxu0
    %270 = vmatprep.subr.mxu0 0.0
    %v271 = vand.u32 %v42, 4294901760
    %272 = vmatpush1.xpose.msra.mxu0 %v271
    %273 = vmatprep.subr.mxu0 0.0
    %274 = vmatpush1.xpose.msra.mxu0 0.0
    %275 = vmatprep.subr.mxu0 0.0
    %276 = vmatpush1.xpose.msra.mxu0 0.0
    %277 = vmatprep.subr.mxu0 0.0
    %278 = vmatpush1.xpose.msra.mxu0 0.0
    %279 = vmatprep.subr.mxu0 0.0
    %280 = vmatpush1.xpose.msra.mxu0 0.0
    %281 = vmatprep.subr.mxu0 0.0
    %282 = vmatpush1.xpose.msra.mxu0 0.0
    %283 = vmatprep.subr.mxu0 0.0
    %284 = vmatpush1.xpose.msra.mxu0 0.0
    %285 = vmatprep.subr.mxu0 0.0
    %286 = vmatpush1.xpose.msra.mxu0 0.0
    %287 = vmatprep.subr.mxu0 0.0
    %288 = vmatpush1.xpose.msra.mxu0 0.0
    %289 = vmatprep.subr.mxu0 0.0
    %290 = vmatpush1.xpose.msra.mxu0 0.0
    %291 = vmatprep.subr.mxu0 0.0
    %292 = vmatpush1.xpose.msra.mxu0 0.0
    %293 = vmatprep.subr.mxu0 0.0
    %294 = vmatpush1.xpose.msra.mxu0 0.0
    %295 = vmatprep.subr.mxu0 0.0
    %296 = vmatpush1.xpose.msra.mxu0 0.0
    %297 = vmatprep.subr.mxu0 0.0
    %298 = vmatpush1.xpose.msra.mxu0 0.0
    %299 = vmatprep.subr.mxu0 0.0
    %300 = vmatpush1.xpose.msra.mxu0 0.0
    %301 = vmatprep.subr.mxu0 0.0
    %302 = vmatpush1.xpose.msra.mxu0 0.0
    %303 = vmatprep.subr.mxu0 0.0
    %304 = vmatpush1.xpose.msra.mxu0 0.0
    %305 = vmatprep.subr.mxu0 0.0
    %306 = vmatpush1.xpose.msra.mxu0 0.0
    %307 = vmatprep.subr.mxu0 0.0
    %308 = vmatpush1.xpose.msra.mxu0 0.0
    %309 = vmatprep.subr.mxu0 0.0
    %310 = vmatpush1.xpose.msra.mxu0 0.0
    %311 = vmatprep.subr.mxu0 0.0
    %312 = vmatpush1.xpose.msra.mxu0 0.0
    %313 = vmatprep.subr.mxu0 0.0
    %314 = vmatpush1.xpose.msra.mxu0 0.0
    %315 = vmatprep.subr.mxu0 0.0
    %316 = vmatpush1.xpose.msra.mxu0 0.0
    %317 = vmatprep.subr.mxu0 0.0
    %318 = vmatpush1.xpose.msra.mxu0 0.0
    %319 = vmatprep.subr.mxu0 0.0
    %320 = vmatpush1.xpose.msra.mxu0 0.0
    %321 = vmatprep.subr.mxu0 0.0
    %322 = vmatpush1.xpose.msra.mxu0 0.0
    %323 = vmatprep.subr.mxu0 0.0
    %324 = vmatpush1.xpose.msra.mxu0 0.0
    %325 = vmatprep.subr.mxu0 0.0
    %326 = vmatpush1.xpose.msra.mxu0 0.0
    %327 = vmatprep.subr.mxu0 0.0
    %328 = vmatpush1.xpose.msra.mxu0 0.0
    %329 = vmatprep.subr.mxu0 0.0
    %330 = vmatpush1.xpose.msra.mxu0 0.0
    %331 = vmatprep.subr.mxu0 0.0
    %332 = vmatpush1.xpose.msra.mxu0 0.0
    %333 = vmatprep.subr.mxu0 0.0
    %334 = vmatpush1.xpose.msra.mxu0 0.0
    %335 = vmatprep.mubr.f32.mxu0 0.0
    %v336 = vand.u32 %v39, 4294901760
    %v337 = vsub.f32 %v39, %v336
    %v338 = vand.u32 %v337, 4294901760
    %339 = vmatmul.mubr.f32.gmra.mrb[0].mxu0 %v338
    %v340 = vpop.f32.mrb[0].mxu0
    %v341 = vadd.f32 %v267, %v340
    %v342 = vpop.f32.mrb[0].mxu0
    %343 = vdwg.mxu0
    %344 = vmatprep.subr.mxu0 0.0
    %v345 = vand.u32 %v42, 4294901760
    %v346 = vsub.f32 %v42, %v345
    %v347 = vand.u32 %v346, 4294901760
    %348 = vmatpush1.xpose.msra.mxu0 %v347
    %349 = vmatprep.subr.mxu0 0.0
    %350 = vmatpush1.xpose.msra.mxu0 0.0
    %351 = vmatprep.subr.mxu0 0.0
    %352 = vmatpush1.xpose.msra.mxu0 0.0
    %353 = vmatprep.subr.mxu0 0.0
    %354 = vmatpush1.xpose.msra.mxu0 0.0
    %355 = vmatprep.subr.mxu0 0.0
    %356 = vmatpush1.xpose.msra.mxu0 0.0
    %357 = vmatprep.subr.mxu0 0.0
    %358 = vmatpush1.xpose.msra.mxu0 0.0
    %359 = vmatprep.subr.mxu0 0.0
    %360 = vmatpush1.xpose.msra.mxu0 0.0
    %361 = vmatprep.subr.mxu0 0.0
    %362 = vmatpush1.xpose.msra.mxu0 0.0
    %363 = vmatprep.subr.mxu0 0.0
    %364 = vmatpush1.xpose.msra.mxu0 0.0
    %365 = vmatprep.subr.mxu0 0.0
    %366 = vmatpush1.xpose.msra.mxu0 0.0
    %367 = vmatprep.subr.mxu0 0.0
    %368 = vmatpush1.xpose.msra.mxu0 0.0
    %369 = vmatprep.subr.mxu0 0.0
    %370 = vmatpush1.xpose.msra.mxu0 0.0
    %371 = vmatprep.subr.mxu0 0.0
    %372 = vmatpush1.xpose.msra.mxu0 0.0
    %373 = vmatprep.subr.mxu0 0.0
    %374 = vmatpush1.xpose.msra.mxu0 0.0
    %375 = vmatprep.subr.mxu0 0.0
    %376 = vmatpush1.xpose.msra.mxu0 0.0
    %377 = vmatprep.subr.mxu0 0.0
    %378 = vmatpush1.xpose.msra.mxu0 0.0
    %379 = vmatprep.subr.mxu0 0.0
    %380 = vmatpush1.xpose.msra.mxu0 0.0
    %381 = vmatprep.subr.mxu0 0.0
    %382 = vmatpush1.xpose.msra.mxu0 0.0
    %383 = vmatprep.subr.mxu0 0.0
    %384 = vmatpush1.xpose.msra.mxu0 0.0
    %385 = vmatprep.subr.mxu0 0.0
    %386 = vmatpush1.xpose.msra.mxu0 0.0
    %387 = vmatprep.subr.mxu0 0.0
    %388 = vmatpush1.xpose.msra.mxu0 0.0
    %389 = vmatprep.subr.mxu0 0.0
    %390 = vmatpush1.xpose.msra.mxu0 0.0
    %391 = vmatprep.subr.mxu0 0.0
    %392 = vmatpush1.xpose.msra.mxu0 0.0
    %393 = vmatprep.subr.mxu0 0.0
    %394 = vmatpush1.xpose.msra.mxu0 0.0
    %395 = vmatprep.subr.mxu0 0.0
    %396 = vmatpush1.xpose.msra.mxu0 0.0
    %397 = vmatprep.subr.mxu0 0.0
    %398 = vmatpush1.xpose.msra.mxu0 0.0
    %399 = vmatprep.subr.mxu0 0.0
    %400 = vmatpush1.xpose.msra.mxu0 0.0
    %401 = vmatprep.subr.mxu0 0.0
    %402 = vmatpush1.xpose.msra.mxu0 0.0
    %403 = vmatprep.subr.mxu0 0.0
    %404 = vmatpush1.xpose.msra.mxu0 0.0
    %405 = vmatprep.subr.mxu0 0.0
    %406 = vmatpush1.xpose.msra.mxu0 0.0
    %407 = vmatprep.subr.mxu0 0.0
    %408 = vmatpush1.xpose.msra.mxu0 0.0
    %409 = vmatprep.subr.mxu0 0.0
    %410 = vmatpush1.xpose.msra.mxu0 0.0
    %411 = vmatprep.mubr.f32.mxu0 0.0
    %v412 = vand.u32 %v39, 4294901760
    %413 = vmatmul.mubr.f32.gmra.mrb[0].mxu0 %v412
    %v414 = vpop.f32.mrb[0].mxu0
    %v415 = vadd.f32 %v341, %v414
    %v416 = vpop.f32.mrb[0].mxu0
    %417 = vdwg.mxu0
    %418 = vmatprep.subr.mxu0 0.0
    %v419 = vand.u32 %v42, 4294901760
    %420 = vmatpush1.xpose.msra.mxu0 %v419
    %421 = vmatprep.subr.mxu0 0.0
    %422 = vmatpush1.xpose.msra.mxu0 0.0
    %423 = vmatprep.subr.mxu0 0.0
    %424 = vmatpush1.xpose.msra.mxu0 0.0
    %425 = vmatprep.subr.mxu0 0.0
    %426 = vmatpush1.xpose.msra.mxu0 0.0
    %427 = vmatprep.subr.mxu0 0.0
    %428 = vmatpush1.xpose.msra.mxu0 0.0
    %429 = vmatprep.subr.mxu0 0.0
    %430 = vmatpush1.xpose.msra.mxu0 0.0
    %431 = vmatprep.subr.mxu0 0.0
    %432 = vmatpush1.xpose.msra.mxu0 0.0
    %433 = vmatprep.subr.mxu0 0.0
    %434 = vmatpush1.xpose.msra.mxu0 0.0
    %435 = vmatprep.subr.mxu0 0.0
    %436 = vmatpush1.xpose.msra.mxu0 0.0
    %437 = vmatprep.subr.mxu0 0.0
    %438 = vmatpush1.xpose.msra.mxu0 0.0
    %439 = vmatprep.subr.mxu0 0.0
    %440 = vmatpush1.xpose.msra.mxu0 0.0
    %441 = vmatprep.subr.mxu0 0.0
    %442 = vmatpush1.xpose.msra.mxu0 0.0
    %443 = vmatprep.subr.mxu0 0.0
    %444 = vmatpush1.xpose.msra.mxu0 0.0
    %445 = vmatprep.subr.mxu0 0.0
    %446 = vmatpush1.xpose.msra.mxu0 0.0
    %447 = vmatprep.subr.mxu0 0.0
    %448 = vmatpush1.xpose.msra.mxu0 0.0
    %449 = vmatprep.subr.mxu0 0.0
    %450 = vmatpush1.xpose.msra.mxu0 0.0
    %451 = vmatprep.subr.mxu0 0.0
    %452 = vmatpush1.xpose.msra.mxu0 0.0
    %453 = vmatprep.subr.mxu0 0.0
    %454 = vmatpush1.xpose.msra.mxu0 0.0
    %455 = vmatprep.subr.mxu0 0.0
    %456 = vmatpush1.xpose.msra.mxu0 0.0
    %457 = vmatprep.subr.mxu0 0.0
    %458 = vmatpush1.xpose.msra.mxu0 0.0
    %459 = vmatprep.subr.mxu0 0.0
    %460 = vmatpush1.xpose.msra.mxu0 0.0
    %461 = vmatprep.subr.mxu0 0.0
    %462 = vmatpush1.xpose.msra.mxu0 0.0
    %463 = vmatprep.subr.mxu0 0.0
    %464 = vmatpush1.xpose.msra.mxu0 0.0
    %465 = vmatprep.subr.mxu0 0.0
    %466 = vmatpush1.xpose.msra.mxu0 0.0
    %467 = vmatprep.subr.mxu0 0.0
    %468 = vmatpush1.xpose.msra.mxu0 0.0
    %469 = vmatprep.subr.mxu0 0.0
    %470 = vmatpush1.xpose.msra.mxu0 0.0
    %471 = vmatprep.subr.mxu0 0.0
    %472 = vmatpush1.xpose.msra.mxu0 0.0
    %473 = vmatprep.subr.mxu0 0.0
    %474 = vmatpush1.xpose.msra.mxu0 0.0
    %475 = vmatprep.subr.mxu0 0.0
    %476 = vmatpush1.xpose.msra.mxu0 0.0
    %477 = vmatprep.subr.mxu0 0.0
    %478 = vmatpush1.xpose.msra.mxu0 0.0
    %479 = vmatprep.subr.mxu0 0.0
    %480 = vmatpush1.xpose.msra.mxu0 0.0
    %481 = vmatprep.subr.mxu0 0.0
    %482 = vmatpush1.xpose.msra.mxu0 0.0
    %483 = vmatprep.mubr.f32.mxu0 0.0
    %v484 = vand.u32 %v39, 4294901760
    %485 = vmatmul.mubr.f32.gmra.mrb[0].mxu0 %v484
    %v486 = vpop.f32.mrb[0].mxu0
    %v487 = vadd.f32 %v415, %v486
    %v488 = vpop.f32.mrb[0].mxu0
    %489 = vdwg.mxu0
    %v490 = vadd.f32 %v35, %v487
    %vm491 = vcmask 57344
    %492 = vst.msk [vmem:[#allocation2] sm:$0x1] %vm491, %v490
    // Predicated region
    $region22: #{tpu_custom_call.1} parent=1 // pred_check
      %p493 = pneg %p28
    $region23: #{tpu_custom_call.1} parent=1 // pred_check_branch
      %495 = sbr.rel (%p493) target = $region25
    $region24: #{tpu_custom_call.1} parent=1 // pred_region
      %v496 = vld [vmem:[#allocation2] sm:$0x1]
      %s497 = sld [smem:[#allocation3]]
      %v498 = vstv %s497
      %v499 = vadd.f32 %v496, %v498
      %500 = vst.msk [vmem:[#allocation7] sm:$0x1] %vm491, %v499
    $region25: #{tpu_custom_call.1} parent=1 // pred_fallthru
      _
    // Predicated region
    $region26: #{tpu_custom_call.1} parent=1 // pred_check
      _
    $region27: #{tpu_custom_call.1} parent=1 // pred_check_branch
      %502 = sbr.rel (0) target = $region29
    $region28: #{tpu_custom_call.1} parent=1 // pred_region
      %s504 = ssub.s32 16, 16
      %505 = vsyncadd [#allocation6], %s504
      %s507 = sshll.u32 [#allocation7], 4
      %s508 = int_to_ptr.vmem [resolvable:$true] %s507
      %510 = dma.vmem_to_hbm [thread:$0]  %s508, 16, %s3, [#allocation6]
    $region29: #{tpu_custom_call.1} parent=1 // pred_fallthru
      _
    // Predicated region
    $region30: #{tpu_custom_call.1} parent=1 // pred_check
      _
    $region31: #{tpu_custom_call.1} parent=1 // pred_check_branch
      %512 = sbr.rel (0) target = $region33
    $region32: #{tpu_custom_call.1} parent=1 // pred_region
      %513 = dma.done [#allocation6], 16
    $region33: #{tpu_custom_call.1} parent=1 // pred_fallthru
      _
    %514 = vsyncpa [#allocation5], 1
    %515 = vsyncpa [#allocation6], 1

</llo_original>
